<compile_context>
chip_gen: v6e
topology: v6e:2x2x1
jax: 0.10.0
libtpu: 0.0.40
codegen_flags: <defaults>
</compile_context>

<pallas_src>
import functools

import jax
import jax.numpy as jnp
from jax import lax
from jax.experimental import pallas as pl
from jax.experimental.pallas import tpu as pltpu


def _dual_margin_kernel(*refs, T, m_i, m_o, alpha, B, Bf, tb_i, tb_o, use_energy):
    if use_energy:
        (logits_ref, labels_ref, logits_ft_ref, out_ref,
         ce_acc, ei_acc, eo_acc) = refs
    else:
        logits_ref, labels_ref, out_ref, ce_acc = refs
        logits_ft_ref = ei_acc = eo_acc = None

    i = pl.program_id(0)

    # ---------------- init accumulators on the first tile ----------------
    @pl.when(i == 0)
    def _():
        ce_acc[...] = jnp.zeros_like(ce_acc)
        if use_energy:
            ei_acc[...] = jnp.zeros_like(ei_acc)
            eo_acc[...] = jnp.zeros_like(eo_acc)

    # ---------------- cross entropy over this logits tile ----------------
    x = logits_ref[...].astype(jnp.float32)                    # (tb_i, C)
    C = x.shape[1]
    row_i = lax.broadcasted_iota(jnp.int32, (tb_i, 1), 0)
    grow_i = i * tb_i + row_i                                   # global row ids
    valid_i = grow_i < B                                        # ragged-tail mask

    mx = jnp.max(x, axis=1, keepdims=True)
    lse = mx + jnp.log(jnp.sum(jnp.exp(x - mx), axis=1, keepdims=True))  # (tb_i,1)

    class_ids = lax.broadcasted_iota(jnp.int32, (tb_i, C), 1)
    labels = labels_ref[...]                                    # (tb_i, 1) int32
    picked = jnp.sum(jnp.where(class_ids == labels, x, 0.0),
                     axis=1, keepdims=True)                     # (tb_i, 1)
    ce_acc[...] += jnp.where(valid_i, lse - picked, 0.0)

    # ---------------- energy margin terms ----------------
    if use_energy:
        inv_T = 1.0 / T   # folded at trace time; T is a static Python float

        # in-distribution energy: reuse the CE logsumexp when T == 1.0
        if T == 1.0:
            e_i = -lse
        else:
            zt = x * inv_T
            mz = jnp.max(zt, axis=1, keepdims=True)
            e_i = -T * (mz + jnp.log(jnp.sum(jnp.exp(zt - mz),
                                             axis=1, keepdims=True)))
        ri = jnp.maximum(e_i - m_i, 0.0)
        ei_acc[...] += jnp.where(valid_i, ri * ri, 0.0)

        # out-of-distribution energy (logits_ft may have a different batch size)
        xf = logits_ft_ref[...].astype(jnp.float32)             # (tb_o, Cf)
        ztf = xf if T == 1.0 else xf * inv_T
        mzf = jnp.max(ztf, axis=1, keepdims=True)
        e_o = -T * (mzf + jnp.log(jnp.sum(jnp.exp(ztf - mzf),
                                          axis=1, keepdims=True)))
        row_o = lax.broadcasted_iota(jnp.int32, (tb_o, 1), 0)
        valid_o = (i * tb_o + row_o) < Bf
        ro = jnp.maximum(m_o - e_o, 0.0)
        eo_acc[...] += jnp.where(valid_o, ro * ro, 0.0)

    # ---------------- finalize on the last tile ----------------
    @pl.when(i == pl.num_programs(0) - 1)
    def _():
        loss = jnp.sum(ce_acc[...], axis=0, keepdims=True) * (1.0 / B)
        if use_energy:
            le = (jnp.sum(ei_acc[...], axis=0, keepdims=True) * (1.0 / B)
                  + jnp.sum(eo_acc[...], axis=0, keepdims=True) * (1.0 / Bf))
            loss = loss + alpha * le
        out_ref[...] = loss.astype(jnp.float32)


def _tile_rows(batch, ncols):
    """Rows per tile: multiple of 8, one block <= ~2 MiB of f32 (fits v7x VMEM)."""
    if batch <= 8:
        return batch                       # full dim (allowed by the block rules)
    rows_budget = max(8, (2 * 1024 * 1024) // max(4 * ncols, 1))
    t = min(batch, 512, rows_budget)
    return max(8, (t // 8) * 8)


def dual_margin_loss(logits, labels, logits_ft=None, *,
                     T=1.0, m_i=-25.0, m_o=-7.0, alpha=0.1):
    """Pallas implementation of DualMarginLoss.forward.

    logits:    [B, C]   (any float dtype; upcast to f32 in-kernel)
    labels:    [B]      (class indices)
    logits_ft: [Bf, C] or None
    returns:   f32 scalar
    """
    B, C = logits.shape
    use_energy = logits_ft is not None
    if use_energy:
        Bf, Cf = logits_ft.shape
    else:
        Bf, Cf = B, C

    labels2d = labels.astype(jnp.int32).reshape(B, 1)

    tb_i = _tile_rows(B, C)
    tb_o = _tile_rows(Bf, Cf) if use_energy else tb_i
    nb_i = pl.cdiv(B, tb_i)
    nb_o = pl.cdiv(Bf, tb_o) if use_energy else 0
    num_tiles = max(nb_i, nb_o)

    li = nb_i - 1
    lo = max(nb_o - 1, 0)
    in_specs = [
        pl.BlockSpec((tb_i, C), lambda i, n=li: (jnp.minimum(i, n), 0)),
        pl.BlockSpec((tb_i, 1), lambda i, n=li: (jnp.minimum(i, n), 0)),
    ]
    operands = [logits, labels2d]
    scratch = [pltpu.VMEM((tb_i, 1), jnp.float32)]                 # ce partial sums
    if use_energy:
        in_specs.append(
            pl.BlockSpec((tb_o, Cf), lambda i, n=lo: (jnp.minimum(i, n), 0)))
        operands.append(logits_ft)
        scratch += [pltpu.VMEM((tb_i, 1), jnp.float32),            # e_i partial sums
                    pltpu.VMEM((tb_o, 1), jnp.float32)]            # e_o partial sums

    kernel = functools.partial(
        _dual_margin_kernel,
        T=float(T), m_i=float(m_i), m_o=float(m_o), alpha=float(alpha),
        B=B, Bf=Bf, tb_i=tb_i, tb_o=tb_o, use_energy=use_energy)

    out = pl.pallas_call(
        kernel,
        out_shape=jax.ShapeDtypeStruct((1, 1), jnp.float32),
        grid_spec=pltpu.PrefetchScalarGridSpec(
            num_scalar_prefetch=0,
            grid=(num_tiles,),
            in_specs=in_specs,
            out_specs=pl.BlockSpec((1, 1), lambda i: (0, 0)),
            scratch_shapes=scratch),
        compiler_params=pltpu.CompilerParams(
            dimension_semantics=("arbitrary",)),
    )(*operands)
    return out[0, 0]


def _reference(logits, labels, logits_ft, T, m_i, m_o, alpha):
    # pure-JAX reference for sanity checking
    lse = jax.scipy.special.logsumexp(logits, axis=1)
    ce = jnp.mean(lse - jnp.take_along_axis(logits, labels[:, None], axis=1)[:, 0])
    e_i = -T * jax.scipy.special.logsumexp(logits / T, axis=1)
    e_o = -T * jax.scipy.special.logsumexp(logits_ft / T, axis=1)
    le = (jnp.mean(jnp.maximum(e_i - m_i, 0.0) ** 2)
          + jnp.mean(jnp.maximum(m_o - e_o, 0.0) ** 2))
    return ce + alpha * le


if __name__ == "__main__":
    key = jax.random.PRNGKey(0)
    k1, k2, k3, k4, k5, k6 = jax.random.split(key, 6)

    T, m_i, m_o, alpha = 1.0, -25.0, -7.0, 0.1

    # --- case 1: small shapes, f32, Bf == B, T == 1 (lse-reuse path) ---
    B, C = 8, 32
    logits = jax.random.normal(k1, (B, C), dtype=jnp.float32) * 3.0
    logits_ft = jax.random.normal(k2, (B, C), dtype=jnp.float32) * 3.0
    labels = jax.random.randint(k3, (B,), 0, C, dtype=jnp.int32)

    loss = jax.block_until_ready(
        dual_margin_loss(logits, labels, logits_ft,
                         T=T, m_i=m_i, m_o=m_o, alpha=alpha))
    ref = _reference(logits, labels, logits_ft, T, m_i, m_o, alpha)
    assert jnp.allclose(loss, ref, rtol=1e-5, atol=1e-5), (loss, ref)

    # --- case 2: ragged tiles, B != Bf, bf16 inputs, T != 1 ---
    B2, Bf2, C2 = 20, 28, 32
    logits2 = (jax.random.normal(k4, (B2, C2)) * 3.0).astype(jnp.bfloat16)
    logits_ft2 = (jax.random.normal(k5, (Bf2, C2)) * 3.0).astype(jnp.bfloat16)
    labels2 = jax.random.randint(k6, (B2,), 0, C2, dtype=jnp.int32)
    loss2 = jax.block_until_ready(
        dual_margin_loss(logits2, labels2, logits_ft2,
                         T=2.0, m_i=m_i, m_o=m_o, alpha=alpha))
    ref2 = _reference(logits2.astype(jnp.float32), labels2,
                      logits_ft2.astype(jnp.float32), 2.0, m_i, m_o, alpha)
    assert jnp.allclose(loss2, ref2, rtol=1e-4, atol=1e-4), (loss2, ref2)

    # --- case 3: logits_ft=None path (CE only, 2-input specialization) ---
    loss3 = jax.block_until_ready(
        dual_margin_loss(logits, labels, None, T=T, m_i=m_i, m_o=m_o, alpha=alpha))
    ref3 = jnp.mean(jax.scipy.special.logsumexp(logits, axis=1)
                    - jnp.take_along_axis(logits, labels[:, None], axis=1)[:, 0])
    assert jnp.allclose(loss3, ref3, rtol=1e-5, atol=1e-5), (loss3, ref3)

    print("KERNEL_OK")
</pallas_src>

<mosaic_0001>
module attributes {stable_mosaic.version = 11 : i64} {
  func.func @_dual_margin_kernel(%arg0: i32, %arg1: memref<8x32xf32, #tpu.memory_space<vmem>>, %arg2: memref<8x1xi32, #tpu.memory_space<vmem>>, %arg3: memref<8x32xf32, #tpu.memory_space<vmem>>, %arg4: memref<1x1xf32, #tpu.memory_space<vmem>>, %arg5: memref<8x1xf32, #tpu.memory_space<vmem>>, %arg6: memref<8x1xf32, #tpu.memory_space<vmem>>, %arg7: memref<8x1xf32, #tpu.memory_space<vmem>>) attributes {dimension_semantics = [#tpu.dimension_semantics<arbitrary>], iteration_bounds = array<i64: 1>, scalar_prefetch = 0 : i64, scratch_operands = 3 : i64, tpu.core_type = #tpu.core_type<tc>, window_params = [{transform_indices = @transform_0, window_bounds = array<i64: 8, 32>}, {transform_indices = @transform_1, window_bounds = array<i64: 8, 1>}, {transform_indices = @transform_2, window_bounds = array<i64: 8, 32>}, {pipeline_mode = #tpu.pipeline_mode<synchronous>, transform_indices = @transform_3, window_bounds = array<i64: 1, 1>}]} {
    %c0_i32 = arith.constant 0 : i32
    %0 = arith.cmpi eq, %arg0, %c0_i32 : i32
    %1 = arith.extui %0 : i1 to i32
    %c0_i32_0 = arith.constant 0 : i32
    %2 = arith.cmpi ne, %1, %c0_i32_0 : i32
    scf.if %2 {
      %cst_37 = arith.constant 0.000000e+00 : f32
      %76 = vector.broadcast %cst_37 : f32 to vector<8x1xf32>
      %c0_38 = arith.constant 0 : index
      %c0_39 = arith.constant 0 : index
      %77 = vector.load %arg5[%c0_38, %c0_39] : memref<8x1xf32, #tpu.memory_space<vmem>>, vector<8x1xf32>
      tpu.vector_store %arg5[%c0_38, %c0_39], %76 {strides = array<i32>} : memref<8x1xf32, #tpu.memory_space<vmem>>, vector<8x1xf32>,
      %cst_40 = arith.constant 0.000000e+00 : f32
      %78 = vector.broadcast %cst_40 : f32 to vector<8x1xf32>
      %c0_41 = arith.constant 0 : index
      %c0_42 = arith.constant 0 : index
      %79 = vector.load %arg6[%c0_41, %c0_42] : memref<8x1xf32, #tpu.memory_space<vmem>>, vector<8x1xf32>
      tpu.vector_store %arg6[%c0_41, %c0_42], %78 {strides = array<i32>} : memref<8x1xf32, #tpu.memory_space<vmem>>, vector<8x1xf32>,
      %cst_43 = arith.constant 0.000000e+00 : f32
      %80 = vector.broadcast %cst_43 : f32 to vector<8x1xf32>
      %c0_44 = arith.constant 0 : index
      %c0_45 = arith.constant 0 : index
      %81 = vector.load %arg7[%c0_44, %c0_45] : memref<8x1xf32, #tpu.memory_space<vmem>>, vector<8x1xf32>
      tpu.vector_store %arg7[%c0_44, %c0_45], %80 {strides = array<i32>} : memref<8x1xf32, #tpu.memory_space<vmem>>, vector<8x1xf32>,
    } else {
    }
    %c0 = arith.constant 0 : index
    %c0_1 = arith.constant 0 : index
    %3 = vector.load %arg1[%c0, %c0_1] : memref<8x32xf32, #tpu.memory_space<vmem>>, vector<8x32xf32>
    %4 = tpu.iota {dimensions = array<i32: 0>} : vector<8x1xi32>
    %c8_i32 = arith.constant 8 : i32
    %5 = arith.muli %arg0, %c8_i32 : i32
    %6 = vector.broadcast %5 : i32 to vector<8x1xi32>
    %7 = arith.addi %6, %4 : vector<8x1xi32>
    %c8_i32_2 = arith.constant 8 : i32
    %8 = vector.broadcast %c8_i32_2 : i32 to vector<8x1xi32>
    %9 = arith.cmpi slt, %7, %8 : vector<8x1xi32>
    %cst = arith.constant dense<0xFF800000> : vector<8xf32>
    %10 = vector.multi_reduction <maximumf>, %3, %cst [1] : vector<8x32xf32> to vector<8xf32>
    %11 = vector.shape_cast %10 : vector<8xf32> to vector<8x1xf32>
    %12 = vector.broadcast %11 : vector<8x1xf32> to vector<8x32xf32>
    %13 = arith.subf %3, %12 : vector<8x32xf32>
    %14 = math.exp %13 : vector<8x32xf32>
    %cst_3 = arith.constant dense<0.000000e+00> : vector<8xf32>
    %15 = vector.multi_reduction <add>, %14, %cst_3 [1] : vector<8x32xf32> to vector<8xf32>
    %16 = vector.shape_cast %15 : vector<8xf32> to vector<8x1xf32>
    %17 = math.log %16 : vector<8x1xf32>
    %18 = arith.addf %11, %17 : vector<8x1xf32>
    %19 = tpu.iota {dimensions = array<i32: 1>} : vector<8x32xi32>
    %c0_4 = arith.constant 0 : index
    %c0_5 = arith.constant 0 : index
    %20 = vector.load %arg2[%c0_4, %c0_5] : memref<8x1xi32, #tpu.memory_space<vmem>>, vector<8x1xi32>
    %21 = vector.broadcast %20 : vector<8x1xi32> to vector<8x32xi32>
    %22 = arith.cmpi eq, %19, %21 : vector<8x32xi32>
    %cst_6 = arith.constant 0.000000e+00 : f32
    %23 = vector.broadcast %cst_6 : f32 to vector<8x32xf32>
    %24 = arith.select %22, %3, %23 : vector<8x32xi1>, vector<8x32xf32>
    %cst_7 = arith.constant dense<0.000000e+00> : vector<8xf32>
    %25 = vector.multi_reduction <add>, %24, %cst_7 [1] : vector<8x32xf32> to vector<8xf32>
    %26 = vector.shape_cast %25 : vector<8xf32> to vector<8x1xf32>
    %c0_8 = arith.constant 0 : index
    %c0_9 = arith.constant 0 : index
    %27 = vector.load %arg5[%c0_8, %c0_9] : memref<8x1xf32, #tpu.memory_space<vmem>>, vector<8x1xf32>
    %28 = arith.subf %18, %26 : vector<8x1xf32>
    %cst_10 = arith.constant 0.000000e+00 : f32
    %29 = vector.broadcast %cst_10 : f32 to vector<8x1xf32>
    %30 = arith.select %9, %28, %29 : vector<8x1xi1>, vector<8x1xf32>
    %31 = arith.addf %27, %30 : vector<8x1xf32>
    %c0_11 = arith.constant 0 : index
    %c0_12 = arith.constant 0 : index
    %32 = vector.load %arg5[%c0_11, %c0_12] : memref<8x1xf32, #tpu.memory_space<vmem>>, vector<8x1xf32>
    tpu.vector_store %arg5[%c0_11, %c0_12], %31 {strides = array<i32>} : memref<8x1xf32, #tpu.memory_space<vmem>>, vector<8x1xf32>,
    %cst_13 = arith.constant 0.000000e+00 : f32
    %33 = vector.broadcast %cst_13 : f32 to vector<8x1xf32>
    %34 = arith.subf %33, %18 : vector<8x1xf32>
    %cst_14 = arith.constant -2.500000e+01 : f32
    %35 = vector.broadcast %cst_14 : f32 to vector<8x1xf32>
    %36 = arith.subf %34, %35 : vector<8x1xf32>
    %cst_15 = arith.constant 0.000000e+00 : f32
    %37 = vector.broadcast %cst_15 : f32 to vector<8x1xf32>
    %38 = arith.maximumf %36, %37 : vector<8x1xf32>
    %c0_16 = arith.constant 0 : index
    %c0_17 = arith.constant 0 : index
    %39 = vector.load %arg6[%c0_16, %c0_17] : memref<8x1xf32, #tpu.memory_space<vmem>>, vector<8x1xf32>
    %40 = arith.mulf %38, %38 : vector<8x1xf32>
    %cst_18 = arith.constant 0.000000e+00 : f32
    %41 = vector.broadcast %cst_18 : f32 to vector<8x1xf32>
    %42 = arith.select %9, %40, %41 : vector<8x1xi1>, vector<8x1xf32>
    %43 = arith.addf %39, %42 : vector<8x1xf32>
    %c0_19 = arith.constant 0 : index
    %c0_20 = arith.constant 0 : index
    %44 = vector.load %arg6[%c0_19, %c0_20] : memref<8x1xf32, #tpu.memory_space<vmem>>, vector<8x1xf32>
    tpu.vector_store %arg6[%c0_19, %c0_20], %43 {strides = array<i32>} : memref<8x1xf32, #tpu.memory_space<vmem>>, vector<8x1xf32>,
    %c0_21 = arith.constant 0 : index
    %c0_22 = arith.constant 0 : index
    %45 = vector.load %arg3[%c0_21, %c0_22] : memref<8x32xf32, #tpu.memory_space<vmem>>, vector<8x32xf32>
    %cst_23 = arith.constant dense<0xFF800000> : vector<8xf32>
    %46 = vector.multi_reduction <maximumf>, %45, %cst_23 [1] : vector<8x32xf32> to vector<8xf32>
    %47 = vector.shape_cast %46 : vector<8xf32> to vector<8x1xf32>
    %48 = vector.broadcast %47 : vector<8x1xf32> to vector<8x32xf32>
    %49 = arith.subf %45, %48 : vector<8x32xf32>
    %50 = math.exp %49 : vector<8x32xf32>
    %cst_24 = arith.constant dense<0.000000e+00> : vector<8xf32>
    %51 = vector.multi_reduction <add>, %50, %cst_24 [1] : vector<8x32xf32> to vector<8xf32>
    %52 = vector.shape_cast %51 : vector<8xf32> to vector<8x1xf32>
    %53 = math.log %52 : vector<8x1xf32>
    %54 = arith.addf %47, %53 : vector<8x1xf32>
    %cst_25 = arith.constant -1.000000e+00 : f32
    %55 = vector.broadcast %cst_25 : f32 to vector<8x1xf32>
    %56 = arith.mulf %55, %54 : vector<8x1xf32>
    %57 = tpu.iota {dimensions = array<i32: 0>} : vector<8x1xi32>
    %c8_i32_26 = arith.constant 8 : i32
    %58 = arith.muli %arg0, %c8_i32_26 : i32
    %59 = vector.broadcast %58 : i32 to vector<8x1xi32>
    %60 = arith.addi %59, %57 : vector<8x1xi32>
    %c8_i32_27 = arith.constant 8 : i32
    %61 = vector.broadcast %c8_i32_27 : i32 to vector<8x1xi32>
    %62 = arith.cmpi slt, %60, %61 : vector<8x1xi32>
    %cst_28 = arith.constant -7.000000e+00 : f32
    %63 = vector.broadcast %cst_28 : f32 to vector<8x1xf32>
    %64 = arith.subf %63, %56 : vector<8x1xf32>
    %cst_29 = arith.constant 0.000000e+00 : f32
    %65 = vector.broadcast %cst_29 : f32 to vector<8x1xf32>
    %66 = arith.maximumf %64, %65 : vector<8x1xf32>
    %c0_30 = arith.constant 0 : index
    %c0_31 = arith.constant 0 : index
    %67 = vector.load %arg7[%c0_30, %c0_31] : memref<8x1xf32, #tpu.memory_space<vmem>>, vector<8x1xf32>
    %68 = arith.mulf %66, %66 : vector<8x1xf32>
    %cst_32 = arith.constant 0.000000e+00 : f32
    %69 = vector.broadcast %cst_32 : f32 to vector<8x1xf32>
    %70 = arith.select %62, %68, %69 : vector<8x1xi1>, vector<8x1xf32>
    %71 = arith.addf %67, %70 : vector<8x1xf32>
    %c0_33 = arith.constant 0 : index
    %c0_34 = arith.constant 0 : index
    %72 = vector.load %arg7[%c0_33, %c0_34] : memref<8x1xf32, #tpu.memory_space<vmem>>, vector<8x1xf32>
    tpu.vector_store %arg7[%c0_33, %c0_34], %71 {strides = array<i32>} : memref<8x1xf32, #tpu.memory_space<vmem>>, vector<8x1xf32>,
    %c0_i32_35 = arith.constant 0 : i32
    %73 = arith.cmpi eq, %arg0, %c0_i32_35 : i32
    %74 = arith.extui %73 : i1 to i32
    %c0_i32_36 = arith.constant 0 : i32
    %75 = arith.cmpi ne, %74, %c0_i32_36 : i32
    scf.if %75 {
      %c0_37 = arith.constant 0 : index
      %c0_38 = arith.constant 0 : index
      %76 = vector.load %arg5[%c0_37, %c0_38] : memref<8x1xf32, #tpu.memory_space<vmem>>, vector<8x1xf32>
      %cst_39 = arith.constant dense<0.000000e+00> : vector<1xf32>
      %77 = vector.multi_reduction <add>, %76, %cst_39 [0] : vector<8x1xf32> to vector<1xf32>
      %78 = vector.shape_cast %77 : vector<1xf32> to vector<1x1xf32>
      %cst_40 = arith.constant 1.250000e-01 : f32
      %79 = vector.broadcast %cst_40 : f32 to vector<1x1xf32>
      %80 = arith.mulf %78, %79 : vector<1x1xf32>
      %c0_41 = arith.constant 0 : index
      %c0_42 = arith.constant 0 : index
      %81 = vector.load %arg6[%c0_41, %c0_42] : memref<8x1xf32, #tpu.memory_space<vmem>>, vector<8x1xf32>
      %cst_43 = arith.constant dense<0.000000e+00> : vector<1xf32>
      %82 = vector.multi_reduction <add>, %81, %cst_43 [0] : vector<8x1xf32> to vector<1xf32>
      %83 = vector.shape_cast %82 : vector<1xf32> to vector<1x1xf32>
      %cst_44 = arith.constant 1.250000e-01 : f32
      %84 = vector.broadcast %cst_44 : f32 to vector<1x1xf32>
      %85 = arith.mulf %83, %84 : vector<1x1xf32>
      %c0_45 = arith.constant 0 : index
      %c0_46 = arith.constant 0 : index
      %86 = vector.load %arg7[%c0_45, %c0_46] : memref<8x1xf32, #tpu.memory_space<vmem>>, vector<8x1xf32>
      %cst_47 = arith.constant dense<0.000000e+00> : vector<1xf32>
      %87 = vector.multi_reduction <add>, %86, %cst_47 [0] : vector<8x1xf32> to vector<1xf32>
      %88 = vector.shape_cast %87 : vector<1xf32> to vector<1x1xf32>
      %cst_48 = arith.constant 1.250000e-01 : f32
      %89 = vector.broadcast %cst_48 : f32 to vector<1x1xf32>
      %90 = arith.mulf %88, %89 : vector<1x1xf32>
      %91 = arith.addf %85, %90 : vector<1x1xf32>
      %cst_49 = arith.constant 1.000000e-01 : f32
      %92 = vector.broadcast %cst_49 : f32 to vector<1x1xf32>
      %93 = arith.mulf %92, %91 : vector<1x1xf32>
      %94 = arith.addf %80, %93 : vector<1x1xf32>
      %c0_50 = arith.constant 0 : index
      %c0_51 = arith.constant 0 : index
      %95 = vector.load %arg4[%c0_50, %c0_51] : memref<1x1xf32, #tpu.memory_space<vmem>>, vector<1x1xf32>
      tpu.vector_store %arg4[%c0_50, %c0_51], %94 {strides = array<i32>} : memref<1x1xf32, #tpu.memory_space<vmem>>, vector<1x1xf32>,
    } else {
    }
    return
  }
  func.func @transform_0(%arg0: i32) -> (i32, i32) {
    %c0_i32 = arith.constant 0 : i32
    %0 = arith.minsi %arg0, %c0_i32 : i32
    %c0_i32_0 = arith.constant 0 : i32
    %c0_i32_1 = arith.constant 0 : i32
    return %0, %c0_i32_0 : i32, i32
  }
  func.func @transform_1(%arg0: i32) -> (i32, i32) {
    %c0_i32 = arith.constant 0 : i32
    %0 = arith.minsi %arg0, %c0_i32 : i32
    %c0_i32_0 = arith.constant 0 : i32
    %c0_i32_1 = arith.constant 0 : i32
    return %0, %c0_i32_0 : i32, i32
  }
  func.func @transform_2(%arg0: i32) -> (i32, i32) {
    %c0_i32 = arith.constant 0 : i32
    %0 = arith.minsi %arg0, %c0_i32 : i32
    %c0_i32_0 = arith.constant 0 : i32
    %c0_i32_1 = arith.constant 0 : i32
    return %0, %c0_i32_0 : i32, i32
  }
  func.func @transform_3(%arg0: i32) -> (i32, i32) {
    %c0_i32 = arith.constant 0 : i32
    %c0_i32_0 = arith.constant 0 : i32
    %c0_i32_1 = arith.constant 0 : i32
    return %c0_i32, %c0_i32_0 : i32, i32
  }
}

</mosaic_0001>

<llo_original>
// kernel: tpu_custom_call.1
$region0: #{tpu_custom_call.1}
  #allocation0 [shape = 'u32[]', space=smem, size = 0x4, offset = 0x4, fixed_abs, tag = 'smem constant byte address 0x4 - core index']
  #allocation1 [shape = 'u32[144,128]{1,0:T(1,128)}', space=vmem, size = 0x12000, scoped, tag = 'internal scratch']
  #allocation2 [shape = 'f32[8,1]{1,0:T(8,128)}', space=vmem, size = 0x1000, scoped, tag = 'scratch operand']
  #allocation3 [shape = 'f32[8,1]{1,0:T(8,128)}', space=vmem, size = 0x1000, scoped, tag = 'scratch operand']
  #allocation4 [shape = 'f32[8,1]{1,0:T(8,128)}', space=vmem, size = 0x1000, scoped, tag = 'scratch operand']
  %s0 = inlined_call_operand.vmem [shape: f32[8,32], index: 0, kind: input, shape index: {}]
  %s1 = inlined_call_operand.vmem [shape: s32[8,1], index: 1, kind: input, shape index: {}]
  %s2 = inlined_call_operand.hbm [shape: f32[8,32], index: 2, kind: input, shape index: {}]
  %s3 = inlined_call_operand.hbm [shape: f32[1,1], index: 3, kind: output, shape index: {}]
  %s4 = sld [smem:[#allocation0]]
  $region34: #{tpu_custom_call.1} parent=0
    _
  %s6 = ssub.s32 1, %s4
  %s7 = scalar_select 0, %s6, %s4
  $region1: #{tpu_custom_call.1} parent=0
    #allocation5 [shape = 'u8[4096]{0}', space=vmem, size = 0x1000, scoped, tag = 'input window, operand 2, single buffered']
    #allocation6 [shape = 's32[1]{0}', space=sflag, size = 0x4, scoped, tag = 'scoped memory for tpu_custom_call.1']
    #allocation7 [shape = 's32[1]{0}', space=sflag, size = 0x4, scoped, tag = 'scoped memory for tpu_custom_call.1']
    #allocation8 [shape = 'u8[512]{0}', space=vmem, size = 0x400, scoped, tag = 'output window, operand 0, single buffered']
    %8 = vsyncpa [#allocation6], 0
    %9 = vsyncpa [#allocation7], 0
    // Predicated region
    $region2: #{tpu_custom_call.1} parent=1 // pred_check
      _
    $region3: #{tpu_custom_call.1} parent=1 // pred_check_branch
      %11 = sbr.rel (0) target = $region5
    $region4: #{tpu_custom_call.1} parent=1 // pred_region
      _
    $region5: #{tpu_custom_call.1} parent=1 // pred_fallthru
      _
    // Predicated region
    $region6: #{tpu_custom_call.1} parent=1 // pred_check
      _
    $region7: #{tpu_custom_call.1} parent=1 // pred_check_branch
      %13 = sbr.rel (0) target = $region9
    $region8: #{tpu_custom_call.1} parent=1 // pred_region
      _
    $region9: #{tpu_custom_call.1} parent=1 // pred_fallthru
      _
    // Predicated region
    $region10: #{tpu_custom_call.1} parent=1 // pred_check
      _
    $region11: #{tpu_custom_call.1} parent=1 // pred_check_branch
      %15 = sbr.rel (0) target = $region13
    $region12: #{tpu_custom_call.1} parent=1 // pred_region
      %s17 = ssub.s32 128, 128
      %18 = vsyncadd [#allocation6], %s17
      %s20 = sshll.u32 [#allocation5], 4
      %s21 = int_to_ptr.vmem [resolvable:$true] %s20
      %23 = dma.hbm_to_vmem [thread:$0]  %s2, 128, %s21, [#allocation6]
    $region13: #{tpu_custom_call.1} parent=1 // pred_fallthru
      _
    // Predicated region
    $region14: #{tpu_custom_call.1} parent=1 // pred_check
      _
    $region15: #{tpu_custom_call.1} parent=1 // pred_check_branch
      %25 = sbr.rel (0) target = $region17
    $region16: #{tpu_custom_call.1} parent=1 // pred_region
      %26 = dma.done [#allocation6], 128
    $region17: #{tpu_custom_call.1} parent=1 // pred_fallthru
      _
    %p27 = scmp.eq.s32.totalorder 0, 0
    // Predicated region
    $region18: #{tpu_custom_call.1} parent=1 // pred_check
      %p28 = pneg %p27
    $region19: #{tpu_custom_call.1} parent=1 // pred_check_branch
      %30 = sbr.rel (%p28) target = $region21
    $region20: #{tpu_custom_call.1} parent=1 // pred_region
      %vm31 = vcmask 7168
      %32 = vst.msk [vmem:[#allocation2] sm:$0xff] %vm31, 0.0
      %33 = vst.msk [vmem:[#allocation3] sm:$0xff] %vm31, 0.0
      %34 = vst.msk [vmem:[#allocation4] sm:$0xff] %vm31, 0.0
    $region21: #{tpu_custom_call.1} parent=1 // pred_fallthru
      _
    %v35 = vld [vmem:[%s0] sm:$0xff]
    %v36 = vlaneseq
    %v37 = vshrl.u32 %v36, 7
    %s38 = smul.u32 0, 8
    %v39 = vstv %s38
    %v40 = vadd.s32 %v39, %v37
    %vm41 = vcmp.lt.s32.totalorder %v40, 8
    %vm42 = vcmask 261120
    %v43 = vsel %vm42, %v35, -inf
    %44 = vmax.xlane.f32.xlu0 %v43
    %v45 = vpop.xlane.xlu0 %44
    %v46 = vsub.f32 %v35, %v45
    %v47 = vmul.f32 %v46, 1.442695
    %v48 = vpow.pop %v47
    %v49 = vsel %vm42, %v48, 0.0
    %50 = vadd.xlane.f32.xlu0 %v49
    %v51 = vpop.xlane.xlu0 %50
    %v52 = vlog2.pop %v51
    %v53 = vmul.f32 %v52, 0.6931472
    %v54 = vadd.f32 %v45, %v53
    %v55 = vlaneseq
    %v56 = vand.u32 %v55, 127
    %v57 = vld [vmem:[%s1] sm:$0xff]
    %58 = vset.pattern.permute.xlu0 0
    %59 = vperm.xlu0 %58, %v57
    %v60 = vpop.permute.xlu0 %59
    %vm61 = vcmp.eq.s32.totalorder %v56, %v60
    %v62 = vsel %vm61, %v35, 0.0
    %v63 = vsel %vm42, %v62, 0.0
    %64 = vadd.xlane.f32.xlu0 %v63
    %v65 = vpop.xlane.xlu0 %64
    %v66 = vld [vmem:[#allocation2] sm:$0xff]
    %v67 = vsub.f32 %v54, %v65
    %v68 = vsel %vm41, %v67, 0.0
    %v69 = vadd.f32 %v66, %v68
    %vm70 = vcmask 7168
    %71 = vst.msk [vmem:[#allocation2] sm:$0xff] %vm70, %v69
    %v72 = vsub.f32 0.0, %v54
    %v73 = vsub.f32 %v72, -25.0
    %v74 = vmax.f32 %v73, 0.0
    %v75 = vld [vmem:[#allocation3] sm:$0xff]
    %v76 = vmul.f32 %v74, %v74
    %v77 = vsel %vm41, %v76, 0.0
    %v78 = vadd.f32 %v75, %v77
    %79 = vst.msk [vmem:[#allocation3] sm:$0xff] %vm70, %v78
    %v80 = vld [vmem:[#allocation5] sm:$0xff]
    %v81 = vsel %vm42, %v80, -inf
    %82 = vmax.xlane.f32.xlu0 %v81
    %v83 = vpop.xlane.xlu0 %82
    %v84 = vsub.f32 %v80, %v83
    %v85 = vmul.f32 %v84, 1.442695
    %v86 = vpow.pop %v85
    %v87 = vsel %vm42, %v86, 0.0
    %88 = vadd.xlane.f32.xlu0 %v87
    %v89 = vpop.xlane.xlu0 %88
    %v90 = vlog2.pop %v89
    %v91 = vmul.f32 %v90, 0.6931472
    %v92 = vadd.f32 %v83, %v91
    %v93 = vmul.f32 %v92, -1.0
    %v94 = vsub.f32 -7.0, %v93
    %v95 = vmax.f32 %v94, 0.0
    %v96 = vld [vmem:[#allocation4] sm:$0xff]
    %v97 = vmul.f32 %v95, %v95
    %v98 = vsel %vm41, %v97, 0.0
    %v99 = vadd.f32 %v96, %v98
    %100 = vst.msk [vmem:[#allocation4] sm:$0xff] %vm70, %v99
    // Predicated region
    $region22: #{tpu_custom_call.1} parent=1 // pred_check
      %p101 = pneg %p27
    $region23: #{tpu_custom_call.1} parent=1 // pred_check_branch
      %103 = sbr.rel (%p101) target = $region25
    $region24: #{tpu_custom_call.1} parent=1 // pred_region
      %v104 = vld [vmem:[#allocation2] sm:$0xff]
      %v105 = vsel %vm70, %v104, 0.0
      %v106 = vrot.slane %v105, 4
      %v107 = vadd.f32 %v105, %v106
      %v108 = vrot.slane %v107, 2
      %v109 = vadd.f32 %v107, %v108
      %v110 = vrot.slane %v109, 1
      %v111 = vadd.f32 %v109, %v110
      %v112 = vmul.f32 %v111, 0.125
      %v113 = vld [vmem:[#allocation3] sm:$0xff]
      %v114 = vsel %vm70, %v113, 0.0
      %v115 = vrot.slane %v114, 4
      %v116 = vadd.f32 %v114, %v115
      %v117 = vrot.slane %v116, 2
      %v118 = vadd.f32 %v116, %v117
      %v119 = vrot.slane %v118, 1
      %v120 = vadd.f32 %v118, %v119
      %v121 = vmul.f32 %v120, 0.125
      %v122 = vld [vmem:[#allocation4] sm:$0xff]
      %v123 = vsel %vm70, %v122, 0.0
      %v124 = vrot.slane %v123, 4
      %v125 = vadd.f32 %v123, %v124
      %v126 = vrot.slane %v125, 2
      %v127 = vadd.f32 %v125, %v126
      %v128 = vrot.slane %v127, 1
      %v129 = vadd.f32 %v127, %v128
      %v130 = vmul.f32 %v129, 0.125
      %v131 = vadd.f32 %v121, %v130
      %v132 = vmul.f32 %v131, 0.1
      %v133 = vadd.f32 %v112, %v132
      %vm134 = vcmask 0
      %135 = vst.msk [vmem:[#allocation8] sm:$0x1] %vm134, %v133
    $region25: #{tpu_custom_call.1} parent=1 // pred_fallthru
      _
    // Predicated region
    $region26: #{tpu_custom_call.1} parent=1 // pred_check
      _
    $region27: #{tpu_custom_call.1} parent=1 // pred_check_branch
      %137 = sbr.rel (0) target = $region29
    $region28: #{tpu_custom_call.1} parent=1 // pred_region
      %s139 = ssub.s32 16, 16
      %140 = vsyncadd [#allocation7], %s139
      %s142 = sshll.u32 [#allocation8], 4
      %s143 = int_to_ptr.vmem [resolvable:$true] %s142
      %145 = dma.vmem_to_hbm [thread:$0]  %s143, 16, %s3, [#allocation7]
    $region29: #{tpu_custom_call.1} parent=1 // pred_fallthru
      _
    // Predicated region
    $region30: #{tpu_custom_call.1} parent=1 // pred_check
      _
    $region31: #{tpu_custom_call.1} parent=1 // pred_check_branch
      %147 = sbr.rel (0) target = $region33
    $region32: #{tpu_custom_call.1} parent=1 // pred_region
      %148 = dma.done [#allocation7], 16
    $region33: #{tpu_custom_call.1} parent=1 // pred_fallthru
      _
    %149 = vsyncpa [#allocation6], 1
    %150 = vsyncpa [#allocation7], 1

</llo_original>
